<compile_context>
chip_gen: v7x
topology: tpu7x:2x2x1
jax: 0.10.0
libtpu: 0.0.40
codegen_flags: <defaults>
</compile_context>

<pallas_src>
import functools

import jax
import jax.numpy as jnp
from jax.experimental import pallas as pl
from jax.experimental.pallas import tpu as pltpu

LANE = 128  # TPU vreg lane width.


def _round_up(n, m):
    return ((n + m - 1) // m) * m


def mlp_kernel(x_ref,
               w1_ref, b1_ref,
               w2_ref, b2_ref,
               w3_ref, b3_ref,
               w4_ref, b4_ref,
               o_ref):
    # Matmul operand dtype is whatever the weights were pre-cast to.
    mm_dtype = w1_ref.dtype

    def sigmoid(v):
        # Single-EUP-op form of the logistic: 0.5*(tanh(x/2)+1).
        return 0.5 * jnp.tanh(0.5 * v) + 0.5

    x = x_ref[...].astype(mm_dtype)

    # Layer 1: Linear + sigmoid (padded lanes -> 0.5, killed by zero rows of w2)
    h = jnp.dot(x, w1_ref[...], preferred_element_type=jnp.float32) + b1_ref[...]
    h = sigmoid(h)

    # Layer 2: Linear + sigmoid
    h = jnp.dot(h.astype(mm_dtype), w2_ref[...],
                preferred_element_type=jnp.float32) + b2_ref[...]
    h = sigmoid(h)

    # Layer 3: Linear + relu (padded lanes -> 0, killed by zero rows of w4)
    h = jnp.dot(h.astype(mm_dtype), w3_ref[...],
                preferred_element_type=jnp.float32) + b3_ref[...]
    h = jnp.maximum(h, 0.0)

    # Layer 4: Linear, written at the true output width (no lane padding).
    o_ref[...] = (jnp.dot(h.astype(mm_dtype), w4_ref[...],
                          preferred_element_type=jnp.float32)
                  + b4_ref[...]).astype(o_ref.dtype)


def prepare_params(params, *, matmul_dtype=jnp.float32):
    """One-time prep: zero-pad hidden widths to 128 lanes and pre-cast weights.

    Done outside the per-call path so no pad/cast ops run per forward pass.
    """
    (w1, b1), (w2, b2), (w3, b3), (w4, b4) = params
    in_dim = w1.shape[0]
    out_dim = w4.shape[1]

    def pad_w(w, rows, cols):
        wp = jnp.zeros((rows, cols), matmul_dtype)
        return wp.at[:w.shape[0], :w.shape[1]].set(w.astype(matmul_dtype))

    def pad_b(b, cols):
        bp = jnp.zeros((1, cols), jnp.float32)
        return bp.at[:, :b.shape[-1]].set(b.reshape(1, -1).astype(jnp.float32))

    return ((pad_w(w1, in_dim, LANE), pad_b(b1, LANE)),
            (pad_w(w2, LANE, LANE),   pad_b(b2, LANE)),
            (pad_w(w3, LANE, LANE),   pad_b(b3, LANE)),
            (pad_w(w4, LANE, out_dim), pad_b(b4, out_dim)))


@functools.partial(jax.jit, static_argnames=("block_batch",))
def mlp_forward(x, padded_params, *, block_batch=2048):
    (w1, b1), (w2, b2), (w3, b3), (w4, b4) = padded_params
    batch, in_dim = x.shape
    out_dim = w4.shape[1]

    # --- Batch tiling: tb rows per grid step (multiple of 8). No wrapper pad;
    # Pallas handles the partial last block (rows are independent, so garbage
    # in over-read tail rows never reaches valid output rows). -----------------
    tb = min(block_batch, _round_up(batch, 8))
    if batch > 8 and pl.cdiv(batch, tb) < 2:
        # Keep >= 2 grid steps so v7x's two TensorCores both get work.
        tb = _round_up(pl.cdiv(batch, 2), 8)
    grid = (pl.cdiv(batch, tb),)

    # Weights/biases: constant index_map -> resident in VMEM across grid steps.
    const2 = lambda i: (0, 0)
    in_specs = [
        pl.BlockSpec((tb, in_dim), lambda i: (i, 0)),    # x tile
        pl.BlockSpec((in_dim, LANE), const2),            # w1
        pl.BlockSpec((1, LANE), const2),                 # b1
        pl.BlockSpec((LANE, LANE), const2),              # w2
        pl.BlockSpec((1, LANE), const2),                 # b2
        pl.BlockSpec((LANE, LANE), const2),              # w3
        pl.BlockSpec((1, LANE), const2),                 # b3
        pl.BlockSpec((LANE, out_dim), const2),           # w4
        pl.BlockSpec((1, out_dim), const2),              # b4
    ]
    out_specs = pl.BlockSpec((tb, out_dim), lambda i: (i, 0))

    # Advisory cost estimate reflecting the actual (padded) work / DMA traffic.
    wbytes = jnp.dtype(w1.dtype).itemsize
    flops = 2 * batch * (in_dim * LANE + LANE * LANE + LANE * LANE + LANE * out_dim)
    transcendentals = batch * (LANE + LANE)              # two sigmoid (tanh) layers
    bytes_accessed = (4 * batch * in_dim                                    # x read
                      + 4 * batch * out_dim                                 # out write
                      + wbytes * (in_dim * LANE + 2 * LANE * LANE + LANE * out_dim)
                      + 4 * (3 * LANE + out_dim))                           # biases

    return pl.pallas_call(
        mlp_kernel,
        out_shape=jax.ShapeDtypeStruct((batch, out_dim), jnp.float32),
        grid=grid,
        in_specs=in_specs,
        out_specs=out_specs,
        compiler_params=pltpu.CompilerParams(
            dimension_semantics=("parallel",)),
        cost_estimate=pl.CostEstimate(flops=flops,
                                      transcendentals=transcendentals,
                                      bytes_accessed=bytes_accessed),
    )(x, w1, b1, w2, b2, w3, b3, w4, b4)


def init_linear(key, in_features, out_features):
    """Deterministic init mimicking nn.Linear's uniform(-1/sqrt(fan_in), +)."""
    kw, kb = jax.random.split(key)
    bound = 1.0 / jnp.sqrt(jnp.float32(in_features))
    # Stored as (in, out) so the kernel can do x @ W.
    w = jax.random.uniform(kw, (in_features, out_features), jnp.float32,
                           minval=-bound, maxval=bound)
    b = jax.random.uniform(kb, (1, out_features), jnp.float32,
                           minval=-bound, maxval=bound)
    return w, b


def reference_forward(x, params):
    (w1, b1), (w2, b2), (w3, b3), (w4, b4) = params
    h = jax.nn.sigmoid(x @ w1 + b1)
    h = jax.nn.sigmoid(h @ w2 + b2)
    h = jnp.maximum(h @ w3 + b3, 0.0)
    return h @ w4 + b4


if __name__ == "__main__":
    # Diabetes dataset: 8 features in, 1 output. batch=16 -> 2 grid steps.
    input_dim, output_dim = 8, 1
    batch = 16

    key = jax.random.PRNGKey(0)
    kx, k1, k2, k3, k4 = jax.random.split(key, 5)

    x = jax.random.normal(kx, (batch, input_dim), jnp.float32)
    params = (
        init_linear(k1, input_dim, 64),
        init_linear(k2, 64, 32),
        init_linear(k3, 32, 16),
        init_linear(k4, 16, output_dim),
    )

    # One-time param prep (pad to 128 lanes, pre-cast). Default f32 keeps the
    # strict 1e-5 check; pass matmul_dtype=jnp.bfloat16 for MXU throughput on
    # v5e/v6e (loosen the tolerance in that case).
    padded_params = prepare_params(params, matmul_dtype=jnp.float32)

    out = mlp_forward(x, padded_params)
    out = jax.block_until_ready(out)

    ref = reference_forward(x, params)
    assert out.shape == (batch, output_dim)
    assert jnp.allclose(out, ref, atol=1e-5, rtol=1e-5)

    print("KERNEL_OK")
</pallas_src>

<mosaic_0001>
module attributes {stable_mosaic.version = 11 : i64} {
  func.func @mlp_kernel(%arg0: i32, %arg1: memref<8x8xf32, #tpu.memory_space<vmem>>, %arg2: memref<8x128xf32, #tpu.memory_space<vmem>>, %arg3: memref<1x128xf32, #tpu.memory_space<vmem>>, %arg4: memref<128x128xf32, #tpu.memory_space<vmem>>, %arg5: memref<1x128xf32, #tpu.memory_space<vmem>>, %arg6: memref<128x128xf32, #tpu.memory_space<vmem>>, %arg7: memref<1x128xf32, #tpu.memory_space<vmem>>, %arg8: memref<128x1xf32, #tpu.memory_space<vmem>>, %arg9: memref<1x1xf32, #tpu.memory_space<vmem>>, %arg10: memref<8x1xf32, #tpu.memory_space<vmem>>) attributes {dimension_semantics = [#tpu.dimension_semantics<parallel>], iteration_bounds = array<i64: 2>, scalar_prefetch = 0 : i64, scratch_operands = 0 : i64, tpu.core_type = #tpu.core_type<tc>, window_params = [{transform_indices = @transform_0, window_bounds = array<i64: 8, 8>}, {pipeline_mode = #tpu.pipeline_mode<synchronous>, transform_indices = @transform_1, window_bounds = array<i64: 8, 128>}, {pipeline_mode = #tpu.pipeline_mode<synchronous>, transform_indices = @transform_2, window_bounds = array<i64: 1, 128>}, {pipeline_mode = #tpu.pipeline_mode<synchronous>, transform_indices = @transform_3, window_bounds = array<i64: 128, 128>}, {pipeline_mode = #tpu.pipeline_mode<synchronous>, transform_indices = @transform_4, window_bounds = array<i64: 1, 128>}, {pipeline_mode = #tpu.pipeline_mode<synchronous>, transform_indices = @transform_5, window_bounds = array<i64: 128, 128>}, {pipeline_mode = #tpu.pipeline_mode<synchronous>, transform_indices = @transform_6, window_bounds = array<i64: 1, 128>}, {pipeline_mode = #tpu.pipeline_mode<synchronous>, transform_indices = @transform_7, window_bounds = array<i64: 128, 1>}, {pipeline_mode = #tpu.pipeline_mode<synchronous>, transform_indices = @transform_8, window_bounds = array<i64: 1, 1>}, {transform_indices = @transform_9, window_bounds = array<i64: 8, 1>}]} {
    %c0 = arith.constant 0 : index
    %c0_0 = arith.constant 0 : index
    %0 = vector.load %arg1[%c0, %c0_0] : memref<8x8xf32, #tpu.memory_space<vmem>>, vector<8x8xf32>
    %c0_1 = arith.constant 0 : index
    %c0_2 = arith.constant 0 : index
    %1 = vector.load %arg2[%c0_1, %c0_2] : memref<8x128xf32, #tpu.memory_space<vmem>>, vector<8x128xf32>
    %cst = arith.constant dense<0.000000e+00> : vector<8x128xf32>
    %2 = tpu.matmul %0, %1, %cst {dimension_numbers = #tpu.dot_dimension_numbers<[1], [0], [0], [1], [0, 0, 1, 1], [], []>} : vector<8x8xf32>, vector<8x128xf32>, vector<8x128xf32> -> vector<8x128xf32>
    %c0_3 = arith.constant 0 : index
    %c0_4 = arith.constant 0 : index
    %3 = vector.load %arg3[%c0_3, %c0_4] : memref<1x128xf32, #tpu.memory_space<vmem>>, vector<1x128xf32>
    %4 = vector.broadcast %3 : vector<1x128xf32> to vector<8x128xf32>
    %5 = arith.addf %2, %4 : vector<8x128xf32>
    %cst_5 = arith.constant 5.000000e-01 : f32
    %6 = vector.broadcast %cst_5 : f32 to vector<8x128xf32>
    %7 = arith.mulf %6, %5 : vector<8x128xf32>
    %8 = math.tanh %7 : vector<8x128xf32>
    %cst_6 = arith.constant 5.000000e-01 : f32
    %9 = vector.broadcast %cst_6 : f32 to vector<8x128xf32>
    %10 = arith.mulf %9, %8 : vector<8x128xf32>
    %cst_7 = arith.constant 5.000000e-01 : f32
    %11 = vector.broadcast %cst_7 : f32 to vector<8x128xf32>
    %12 = arith.addf %10, %11 : vector<8x128xf32>
    %c0_8 = arith.constant 0 : index
    %c0_9 = arith.constant 0 : index
    %13 = vector.load %arg4[%c0_8, %c0_9] : memref<128x128xf32, #tpu.memory_space<vmem>>, vector<128x128xf32>
    %cst_10 = arith.constant dense<0.000000e+00> : vector<8x128xf32>
    %14 = tpu.matmul %12, %13, %cst_10 {dimension_numbers = #tpu.dot_dimension_numbers<[1], [0], [0], [1], [0, 0, 1, 1], [], []>} : vector<8x128xf32>, vector<128x128xf32>, vector<8x128xf32> -> vector<8x128xf32>
    %c0_11 = arith.constant 0 : index
    %c0_12 = arith.constant 0 : index
    %15 = vector.load %arg5[%c0_11, %c0_12] : memref<1x128xf32, #tpu.memory_space<vmem>>, vector<1x128xf32>
    %16 = vector.broadcast %15 : vector<1x128xf32> to vector<8x128xf32>
    %17 = arith.addf %14, %16 : vector<8x128xf32>
    %cst_13 = arith.constant 5.000000e-01 : f32
    %18 = vector.broadcast %cst_13 : f32 to vector<8x128xf32>
    %19 = arith.mulf %18, %17 : vector<8x128xf32>
    %20 = math.tanh %19 : vector<8x128xf32>
    %cst_14 = arith.constant 5.000000e-01 : f32
    %21 = vector.broadcast %cst_14 : f32 to vector<8x128xf32>
    %22 = arith.mulf %21, %20 : vector<8x128xf32>
    %cst_15 = arith.constant 5.000000e-01 : f32
    %23 = vector.broadcast %cst_15 : f32 to vector<8x128xf32>
    %24 = arith.addf %22, %23 : vector<8x128xf32>
    %c0_16 = arith.constant 0 : index
    %c0_17 = arith.constant 0 : index
    %25 = vector.load %arg6[%c0_16, %c0_17] : memref<128x128xf32, #tpu.memory_space<vmem>>, vector<128x128xf32>
    %cst_18 = arith.constant dense<0.000000e+00> : vector<8x128xf32>
    %26 = tpu.matmul %24, %25, %cst_18 {dimension_numbers = #tpu.dot_dimension_numbers<[1], [0], [0], [1], [0, 0, 1, 1], [], []>} : vector<8x128xf32>, vector<128x128xf32>, vector<8x128xf32> -> vector<8x128xf32>
    %c0_19 = arith.constant 0 : index
    %c0_20 = arith.constant 0 : index
    %27 = vector.load %arg7[%c0_19, %c0_20] : memref<1x128xf32, #tpu.memory_space<vmem>>, vector<1x128xf32>
    %28 = vector.broadcast %27 : vector<1x128xf32> to vector<8x128xf32>
    %29 = arith.addf %26, %28 : vector<8x128xf32>
    %cst_21 = arith.constant 0.000000e+00 : f32
    %30 = vector.broadcast %cst_21 : f32 to vector<8x128xf32>
    %31 = arith.maximumf %29, %30 : vector<8x128xf32>
    %c0_22 = arith.constant 0 : index
    %c0_23 = arith.constant 0 : index
    %32 = vector.load %arg8[%c0_22, %c0_23] : memref<128x1xf32, #tpu.memory_space<vmem>>, vector<128x1xf32>
    %cst_24 = arith.constant dense<0.000000e+00> : vector<8x1xf32>
    %33 = tpu.matmul %31, %32, %cst_24 {dimension_numbers = #tpu.dot_dimension_numbers<[1], [0], [0], [1], [0, 0, 1, 1], [], []>} : vector<8x128xf32>, vector<128x1xf32>, vector<8x1xf32> -> vector<8x1xf32>
    %c0_25 = arith.constant 0 : index
    %c0_26 = arith.constant 0 : index
    %34 = vector.load %arg9[%c0_25, %c0_26] : memref<1x1xf32, #tpu.memory_space<vmem>>, vector<1x1xf32>
    %35 = vector.broadcast %34 : vector<1x1xf32> to vector<8x1xf32>
    %36 = arith.addf %33, %35 : vector<8x1xf32>
    %c0_27 = arith.constant 0 : index
    %c0_28 = arith.constant 0 : index
    %37 = vector.load %arg10[%c0_27, %c0_28] : memref<8x1xf32, #tpu.memory_space<vmem>>, vector<8x1xf32>
    tpu.vector_store %arg10[%c0_27, %c0_28], %36 {strides = array<i32>} : memref<8x1xf32, #tpu.memory_space<vmem>>, vector<8x1xf32>,
    return
  }
  func.func @transform_0(%arg0: i32) -> (i32, i32) {
    %c0_i32 = arith.constant 0 : i32
    %c0_i32_0 = arith.constant 0 : i32
    return %arg0, %c0_i32 : i32, i32
  }
  func.func @transform_1(%arg0: i32) -> (i32, i32) {
    %c0_i32 = arith.constant 0 : i32
    %c0_i32_0 = arith.constant 0 : i32
    %c0_i32_1 = arith.constant 0 : i32
    return %c0_i32, %c0_i32_0 : i32, i32
  }
  func.func @transform_2(%arg0: i32) -> (i32, i32) {
    %c0_i32 = arith.constant 0 : i32
    %c0_i32_0 = arith.constant 0 : i32
    %c0_i32_1 = arith.constant 0 : i32
    return %c0_i32, %c0_i32_0 : i32, i32
  }
  func.func @transform_3(%arg0: i32) -> (i32, i32) {
    %c0_i32 = arith.constant 0 : i32
    %c0_i32_0 = arith.constant 0 : i32
    %c0_i32_1 = arith.constant 0 : i32
    return %c0_i32, %c0_i32_0 : i32, i32
  }
  func.func @transform_4(%arg0: i32) -> (i32, i32) {
    %c0_i32 = arith.constant 0 : i32
    %c0_i32_0 = arith.constant 0 : i32
    %c0_i32_1 = arith.constant 0 : i32
    return %c0_i32, %c0_i32_0 : i32, i32
  }
  func.func @transform_5(%arg0: i32) -> (i32, i32) {
    %c0_i32 = arith.constant 0 : i32
    %c0_i32_0 = arith.constant 0 : i32
    %c0_i32_1 = arith.constant 0 : i32
    return %c0_i32, %c0_i32_0 : i32, i32
  }
  func.func @transform_6(%arg0: i32) -> (i32, i32) {
    %c0_i32 = arith.constant 0 : i32
    %c0_i32_0 = arith.constant 0 : i32
    %c0_i32_1 = arith.constant 0 : i32
    return %c0_i32, %c0_i32_0 : i32, i32
  }
  func.func @transform_7(%arg0: i32) -> (i32, i32) {
    %c0_i32 = arith.constant 0 : i32
    %c0_i32_0 = arith.constant 0 : i32
    %c0_i32_1 = arith.constant 0 : i32
    return %c0_i32, %c0_i32_0 : i32, i32
  }
  func.func @transform_8(%arg0: i32) -> (i32, i32) {
    %c0_i32 = arith.constant 0 : i32
    %c0_i32_0 = arith.constant 0 : i32
    %c0_i32_1 = arith.constant 0 : i32
    return %c0_i32, %c0_i32_0 : i32, i32
  }
  func.func @transform_9(%arg0: i32) -> (i32, i32) {
    %c0_i32 = arith.constant 0 : i32
    %c0_i32_0 = arith.constant 0 : i32
    return %arg0, %c0_i32 : i32, i32
  }
}

</mosaic_0001>

<llo_original>
// kernel: mlp_forward.1
$region0: #{mlp_forward.1}
  #allocation0 [shape = 'u32[]', space=smem, size = 0x4, offset = 0x4, fixed_abs, tag = 'smem constant byte address 0x4 - core index']
  #allocation1 [shape = 'u32[144,128]{1,0:T(1,128)}', space=vmem, size = 0x12000, scoped, tag = 'internal scratch']
  #allocation2 [shape = 'f32[1,1]{1,0:T(1,128)S(1)}', space=vmem, size = 0x200, scoped, tag = 'scoped memory for mlp_forward.1']
  %s0 = inlined_call_operand.vmem [shape: f32[16,8], index: 0, kind: input, shape index: {}]
  %s1 = inlined_call_operand.vmem [shape: f32[8,128], index: 1, kind: input, shape index: {}]
  %s2 = inlined_call_operand.vmem [shape: f32[1,128], index: 2, kind: input, shape index: {}]
  %s3 = inlined_call_operand.vmem [shape: f32[128,128], index: 3, kind: input, shape index: {}]
  %s4 = inlined_call_operand.vmem [shape: f32[1,128], index: 4, kind: input, shape index: {}]
  %s5 = inlined_call_operand.hbm [shape: f32[128,128], index: 5, kind: input, shape index: {}]
  %s6 = inlined_call_operand.vmem [shape: f32[1,128], index: 6, kind: input, shape index: {}]
  %s7 = inlined_call_operand.vmem [shape: f32[128,1], index: 7, kind: input, shape index: {}]
  %s8 = inlined_call_operand.<no memory space> [shape: f32[1,1], index: 8, kind: input, shape index: {}]
  %s9 = inlined_call_operand.vmem [shape: f32[16,1], index: 9, kind: output, shape index: {}]
  %s10 = sld [smem:[#allocation0]]
  $region73: #{mlp_forward.1} parent=0
    _
  %s12 = ssub.s32 1, %s10
  %s13 = scalar_select 0, %s12, %s10
  %v14 = vstv %s8
  %15 = vst [vmem:[#allocation2] sm:$0x1] %v14
  $region1: #{mlp_forward.1} parent=0
    #allocation3 [shape = 'u8[65536]{0}', space=vmem, size = 0x10000, scoped, tag = 'input window, operand 5, single buffered']
    #allocation4 [shape = 's32[2]{0}', space=sflag, size = 0x8, scoped, tag = 'scoped memory for mlp_forward.1']
    %16 = vsyncpa [#allocation4], 0
    loop: start=0, step=1, limit=4
    $region2: #{mlp_forward.1} parent=1 // loop_pre_header
      _
    $region3: #{mlp_forward.1} parent=1 // loop_header
      %s18 = sphi 0, %s22
      %p19 = scmp.ge.s32.totalorder %s18, 4
      %s28 = sphi 0, %s30
      %s31 = sphi 0, %s28
      %s32 = sphi 0, %s31
      %s48 = sphi 0, %s32
      %s52 = sphi 0, %s52
      %s54 = sphi 0, %s52
      %s55 = sphi 0, %s54
      %s69 = sphi 0, %s55
      %s73 = sphi 0, %s73
      %s75 = sphi 0, %s73
      %s76 = sphi 0, %s75
      %s90 = sphi 0, %s76
      %s94 = sphi 0, %s94
      %s96 = sphi 0, %s94
      %s97 = sphi 0, %s96
      %s111 = sphi 0, %s97
      %s115 = sphi 0, %s115
      %s117 = sphi 0, %s115
      %s118 = sphi 0, %s117
      %s132 = sphi 0, %s118
      %s136 = sphi 0, %s136
      %s138 = sphi 0, %s136
      %s139 = sphi 0, %s138
      %s153 = sphi 0, %s139
      %s157 = sphi 0, %s157
      %s159 = sphi 0, %s157
      %s160 = sphi 0, %s159
      %s174 = sphi 0, %s160
      %s178 = sphi 0, %s178
      %s180 = sphi 0, %s178
      %s181 = sphi 0, %s180
      %s195 = sphi 0, %s181
      %s199 = sphi 0, %s199
      %s201 = sphi 0, %s199
      %s202 = sphi 0, %s201
      %s216 = sphi 0, %s202
      %s222 = sphi 0, %s224
      %s225 = sphi 0, %s222
      %s226 = sphi 0, %s225
      %s242 = sphi 0, %s226
    $region4: #{mlp_forward.1} parent=1 // loop_header_branch
      %21 = sbr.rel (%p19) target = $region8
    $region5: #{mlp_forward.1} parent=1 // loop_body
      %s23 = ssub.s32 %s18, 1
      %s24 = ssub.s32 %s18, 2
      %s25 = sadd.s32 %s18, 1
      %s26 = ssub.s32 %s18, %s25
      %p27 = scmp.eq.s32.totalorder %s26, 0
      %s29 = sadd.s32 %s28, 1
      %s30 = scalar_select %p27, %s28, %s29
      %p33 = pneg %p27
      %p34 = scmp.eq.s32.totalorder %s18, 1
      %p35 = por %p33, %p34
      %p36 = scmp.ne.s32.totalorder %s28, %s31
      %p37 = scmp.eq.s32.totalorder %s18, 0
      %p38 = por %p36, %p37
      %p39 = scmp.ne.s32.totalorder %s28, %s31
      %p40 = scmp.eq.s32.totalorder %s23, 1
      %p41 = por %p39, %p40
      %p42 = scmp.ne.s32.totalorder %s31, %s32
      %p43 = scmp.eq.s32.totalorder %s23, 0
      %p44 = por %p42, %p43
      %p45 = scmp.ne.s32.totalorder %s31, %s32
      %p46 = scmp.eq.s32.totalorder %s24, 1
      %p47 = por %p45, %p46
      %p49 = scmp.ne.s32.totalorder %s32, %s48
      %p50 = scmp.eq.s32.totalorder %s24, 0
      %p51 = por %p49, %p50
      %s53 = sadd.s32 %s52, 1
      %p56 = scmp.eq.s32.totalorder %s18, 1
      %p57 = scmp.ne.s32.totalorder %s52, %s54
      %p58 = scmp.eq.s32.totalorder %s18, 0
      %p59 = por %p57, %p58
      %p60 = scmp.ne.s32.totalorder %s52, %s54
      %p61 = scmp.eq.s32.totalorder %s23, 1
      %p62 = por %p60, %p61
      %p63 = scmp.ne.s32.totalorder %s54, %s55
      %p64 = scmp.eq.s32.totalorder %s23, 0
      %p65 = por %p63, %p64
      %p66 = scmp.ne.s32.totalorder %s54, %s55
      %p67 = scmp.eq.s32.totalorder %s24, 1
      %p68 = por %p66, %p67
      %p70 = scmp.ne.s32.totalorder %s55, %s69
      %p71 = scmp.eq.s32.totalorder %s24, 0
      %p72 = por %p70, %p71
      %s74 = sadd.s32 %s73, 1
      %p77 = scmp.eq.s32.totalorder %s18, 1
      %p78 = scmp.ne.s32.totalorder %s73, %s75
      %p79 = scmp.eq.s32.totalorder %s18, 0
      %p80 = por %p78, %p79
      %p81 = scmp.ne.s32.totalorder %s73, %s75
      %p82 = scmp.eq.s32.totalorder %s23, 1
      %p83 = por %p81, %p82
      %p84 = scmp.ne.s32.totalorder %s75, %s76
      %p85 = scmp.eq.s32.totalorder %s23, 0
      %p86 = por %p84, %p85
      %p87 = scmp.ne.s32.totalorder %s75, %s76
      %p88 = scmp.eq.s32.totalorder %s24, 1
      %p89 = por %p87, %p88
      %p91 = scmp.ne.s32.totalorder %s76, %s90
      %p92 = scmp.eq.s32.totalorder %s24, 0
      %p93 = por %p91, %p92
      %s95 = sadd.s32 %s94, 1
      %p98 = scmp.eq.s32.totalorder %s18, 1
      %p99 = scmp.ne.s32.totalorder %s94, %s96
      %p100 = scmp.eq.s32.totalorder %s18, 0
      %p101 = por %p99, %p100
      %p102 = scmp.ne.s32.totalorder %s94, %s96
      %p103 = scmp.eq.s32.totalorder %s23, 1
      %p104 = por %p102, %p103
      %p105 = scmp.ne.s32.totalorder %s96, %s97
      %p106 = scmp.eq.s32.totalorder %s23, 0
      %p107 = por %p105, %p106
      %p108 = scmp.ne.s32.totalorder %s96, %s97
      %p109 = scmp.eq.s32.totalorder %s24, 1
      %p110 = por %p108, %p109
      %p112 = scmp.ne.s32.totalorder %s97, %s111
      %p113 = scmp.eq.s32.totalorder %s24, 0
      %p114 = por %p112, %p113
      %s116 = sadd.s32 %s115, 1
      %p119 = scmp.eq.s32.totalorder %s18, 1
      %p120 = scmp.ne.s32.totalorder %s115, %s117
      %p121 = scmp.eq.s32.totalorder %s18, 0
      %p122 = por %p120, %p121
      %p123 = scmp.ne.s32.totalorder %s115, %s117
      %p124 = scmp.eq.s32.totalorder %s23, 1
      %p125 = por %p123, %p124
      %p126 = scmp.ne.s32.totalorder %s117, %s118
      %p127 = scmp.eq.s32.totalorder %s23, 0
      %p128 = por %p126, %p127
      %p129 = scmp.ne.s32.totalorder %s117, %s118
      %p130 = scmp.eq.s32.totalorder %s24, 1
      %p131 = por %p129, %p130
      %p133 = scmp.ne.s32.totalorder %s118, %s132
      %p134 = scmp.eq.s32.totalorder %s24, 0
      %p135 = por %p133, %p134
      %s137 = sadd.s32 %s136, 1
      %p140 = scmp.eq.s32.totalorder %s18, 1
      %p141 = scmp.ne.s32.totalorder %s136, %s138
      %p142 = scmp.eq.s32.totalorder %s18, 0
      %p143 = por %p141, %p142
      %p144 = scmp.ne.s32.totalorder %s136, %s138
      %p145 = scmp.eq.s32.totalorder %s23, 1
      %p146 = por %p144, %p145
      %p147 = scmp.ne.s32.totalorder %s138, %s139
      %p148 = scmp.eq.s32.totalorder %s23, 0
      %p149 = por %p147, %p148
      %p150 = scmp.ne.s32.totalorder %s138, %s139
      %p151 = scmp.eq.s32.totalorder %s24, 1
      %p152 = por %p150, %p151
      %p154 = scmp.ne.s32.totalorder %s139, %s153
      %p155 = scmp.eq.s32.totalorder %s24, 0
      %p156 = por %p154, %p155
      %s158 = sadd.s32 %s157, 1
      %p161 = scmp.eq.s32.totalorder %s18, 1
      %p162 = scmp.ne.s32.totalorder %s157, %s159
      %p163 = scmp.eq.s32.totalorder %s18, 0
      %p164 = por %p162, %p163
      %p165 = scmp.ne.s32.totalorder %s157, %s159
      %p166 = scmp.eq.s32.totalorder %s23, 1
      %p167 = por %p165, %p166
      %p168 = scmp.ne.s32.totalorder %s159, %s160
      %p169 = scmp.eq.s32.totalorder %s23, 0
      %p170 = por %p168, %p169
      %p171 = scmp.ne.s32.totalorder %s159, %s160
      %p172 = scmp.eq.s32.totalorder %s24, 1
      %p173 = por %p171, %p172
      %p175 = scmp.ne.s32.totalorder %s160, %s174
      %p176 = scmp.eq.s32.totalorder %s24, 0
      %p177 = por %p175, %p176
      %s179 = sadd.s32 %s178, 1
      %p182 = scmp.eq.s32.totalorder %s18, 1
      %p183 = scmp.ne.s32.totalorder %s178, %s180
      %p184 = scmp.eq.s32.totalorder %s18, 0
      %p185 = por %p183, %p184
      %p186 = scmp.ne.s32.totalorder %s178, %s180
      %p187 = scmp.eq.s32.totalorder %s23, 1
      %p188 = por %p186, %p187
      %p189 = scmp.ne.s32.totalorder %s180, %s181
      %p190 = scmp.eq.s32.totalorder %s23, 0
      %p191 = por %p189, %p190
      %p192 = scmp.ne.s32.totalorder %s180, %s181
      %p193 = scmp.eq.s32.totalorder %s24, 1
      %p194 = por %p192, %p193
      %p196 = scmp.ne.s32.totalorder %s181, %s195
      %p197 = scmp.eq.s32.totalorder %s24, 0
      %p198 = por %p196, %p197
      %s200 = sadd.s32 %s199, 1
      %p203 = scmp.eq.s32.totalorder %s18, 1
      %p204 = scmp.ne.s32.totalorder %s199, %s201
      %p205 = scmp.eq.s32.totalorder %s18, 0
      %p206 = por %p204, %p205
      %p207 = scmp.ne.s32.totalorder %s199, %s201
      %p208 = scmp.eq.s32.totalorder %s23, 1
      %p209 = por %p207, %p208
      %p210 = scmp.ne.s32.totalorder %s201, %s202
      %p211 = scmp.eq.s32.totalorder %s23, 0
      %p212 = por %p210, %p211
      %p213 = scmp.ne.s32.totalorder %s201, %s202
      %p214 = scmp.eq.s32.totalorder %s24, 1
      %p215 = por %p213, %p214
      %p217 = scmp.ne.s32.totalorder %s202, %s216
      %p218 = scmp.eq.s32.totalorder %s24, 0
      %p219 = por %p217, %p218
      %s220 = ssub.s32 %s18, %s25
      %p221 = scmp.eq.s32.totalorder %s220, 0
      %s223 = sadd.s32 %s222, 1
      %s224 = scalar_select %p221, %s222, %s223
      %p227 = pneg %p221
      %p228 = scmp.eq.s32.totalorder %s18, 1
      %p229 = por %p227, %p228
      %p230 = scmp.ne.s32.totalorder %s222, %s225
      %p231 = scmp.eq.s32.totalorder %s18, 0
      %p232 = por %p230, %p231
      %p233 = scmp.ne.s32.totalorder %s222, %s225
      %p234 = scmp.eq.s32.totalorder %s23, 1
      %p235 = por %p233, %p234
      %p236 = scmp.ne.s32.totalorder %s225, %s226
      %p237 = scmp.eq.s32.totalorder %s23, 0
      %p238 = por %p236, %p237
      %p239 = scmp.ne.s32.totalorder %s225, %s226
      %p240 = scmp.eq.s32.totalorder %s24, 1
      %p241 = por %p239, %p240
      %p243 = scmp.ne.s32.totalorder %s226, %s242
      %p244 = scmp.eq.s32.totalorder %s24, 0
      %p245 = por %p243, %p244
      %p246 = scmp.le.s32.totalorder 1, %s18
      %p247 = scmp.lt.s32.totalorder %s18, 3
      %p248 = pnand %p246, %p247
      %p249 = pneg %p248
      // Predicated region
      $region9: #{mlp_forward.1} parent=5 // pred_check
        _
      $region10: #{mlp_forward.1} parent=5 // pred_check_branch
        %251 = sbr.rel (%p248) target = $region12
      $region11: #{mlp_forward.1} parent=5 // pred_region
        %s252 = ssub.s32 %s18, 1
        // Predicated region
        $region13: #{mlp_forward.1} parent=11 // pred_check
          %p253 = pneg %p65
        $region14: #{mlp_forward.1} parent=11 // pred_check_branch
          %255 = sbr.rel (%p253) target = $region16
        $region15: #{mlp_forward.1} parent=11 // pred_region
          _
        $region16: #{mlp_forward.1} parent=11 // pred_fallthru
          _
        // Predicated region
        $region17: #{mlp_forward.1} parent=11 // pred_check
          %p256 = pneg %p86
        $region18: #{mlp_forward.1} parent=11 // pred_check_branch
          %258 = sbr.rel (%p256) target = $region20
        $region19: #{mlp_forward.1} parent=11 // pred_region
          _
        $region20: #{mlp_forward.1} parent=11 // pred_fallthru
          _
        // Predicated region
        $region21: #{mlp_forward.1} parent=11 // pred_check
          %p259 = pneg %p107
        $region22: #{mlp_forward.1} parent=11 // pred_check_branch
          %261 = sbr.rel (%p259) target = $region24
        $region23: #{mlp_forward.1} parent=11 // pred_region
          _
        $region24: #{mlp_forward.1} parent=11 // pred_fallthru
          _
        // Predicated region
        $region25: #{mlp_forward.1} parent=11 // pred_check
          %p262 = pneg %p128
        $region26: #{mlp_forward.1} parent=11 // pred_check_branch
          %264 = sbr.rel (%p262) target = $region28
        $region27: #{mlp_forward.1} parent=11 // pred_region
          _
        $region28: #{mlp_forward.1} parent=11 // pred_fallthru
          _
        // Predicated region
        $region29: #{mlp_forward.1} parent=11 // pred_check
          %p265 = pneg %p149
        $region30: #{mlp_forward.1} parent=11 // pred_check_branch
          %267 = sbr.rel (%p265) target = $region32
        $region31: #{mlp_forward.1} parent=11 // pred_region
          %s269 = ssub.s32 2048, 2048
          %270 = vsyncadd [#allocation4], %s269
          %s271 = sshll.u32 [#allocation3], 4
          %s272 = int_to_ptr.vmem [resolvable:$true] %s271
          %277 = dma.hbm_to_vmem [thread:$0]  %s5, 2048, %s272, [#allocation4], 128, 128, 8
        $region32: #{mlp_forward.1} parent=11 // pred_fallthru
          _
        // Predicated region
        $region33: #{mlp_forward.1} parent=11 // pred_check
          %p278 = pneg %p170
        $region34: #{mlp_forward.1} parent=11 // pred_check_branch
          %280 = sbr.rel (%p278) target = $region36
        $region35: #{mlp_forward.1} parent=11 // pred_region
          _
        $region36: #{mlp_forward.1} parent=11 // pred_fallthru
          _
        // Predicated region
        $region37: #{mlp_forward.1} parent=11 // pred_check
          %p281 = pneg %p191
        $region38: #{mlp_forward.1} parent=11 // pred_check_branch
          %283 = sbr.rel (%p281) target = $region40
        $region39: #{mlp_forward.1} parent=11 // pred_region
          _
        $region40: #{mlp_forward.1} parent=11 // pred_fallthru
          _
        // Predicated region
        $region41: #{mlp_forward.1} parent=11 // pred_check
          %p284 = pneg %p212
        $region42: #{mlp_forward.1} parent=11 // pred_check_branch
          %286 = sbr.rel (%p284) target = $region44
        $region43: #{mlp_forward.1} parent=11 // pred_region
          _
        $region44: #{mlp_forward.1} parent=11 // pred_fallthru
          _
      $region12: #{mlp_forward.1} parent=5 // pred_fallthru
        _
      %p287 = scmp.lt.s32.totalorder %s18, 2
      // Predicated region
      $region45: #{mlp_forward.1} parent=5 // pred_check
        %p288 = pneg %p287
      $region46: #{mlp_forward.1} parent=5 // pred_check_branch
        %290 = sbr.rel (%p288) target = $region48
      $region47: #{mlp_forward.1} parent=5 // pred_region
        // Predicated region
        $region49: #{mlp_forward.1} parent=47 // pred_check
          %p291 = pneg %p38
        $region50: #{mlp_forward.1} parent=47 // pred_check_branch
          %293 = sbr.rel (%p291) target = $region52
        $region51: #{mlp_forward.1} parent=47 // pred_region
          %p294 = scmp.lt.s32.totalorder %s18, 1
          %s295 = scalar_select %p294, %s18, 1
          %s296 = smul.addr %s295, 8
          %s297 = scalar_lea.vmem %s0, %s296
        $region52: #{mlp_forward.1} parent=47 // pred_fallthru
          _
      $region48: #{mlp_forward.1} parent=5 // pred_fallthru
        _
      %p298 = scmp.le.s32.totalorder 1, %s18
      %p299 = scmp.lt.s32.totalorder %s18, 3
      %p300 = pnand %p298, %p299
      %p301 = pneg %p300
      // Predicated region
      $region53: #{mlp_forward.1} parent=5 // pred_check
        _
      $region54: #{mlp_forward.1} parent=5 // pred_check_branch
        %303 = sbr.rel (%p300) target = $region56
      $region55: #{mlp_forward.1} parent=5 // pred_region
        %s304 = ssub.s32 %s18, 1
        // Predicated region
        $region57: #{mlp_forward.1} parent=55 // pred_check
          %p305 = pneg %p149
        $region58: #{mlp_forward.1} parent=55 // pred_check_branch
          %307 = sbr.rel (%p305) target = $region60
        $region59: #{mlp_forward.1} parent=55 // pred_region
          %308 = dma.done [#allocation4], 2048
        $region60: #{mlp_forward.1} parent=55 // pred_fallthru
          _
        %p309 = scmp.lt.s32.totalorder %s23, 1
        %s310 = scalar_select %p309, %s23, 1
        %s311 = smul.addr %s310, 8
        %s312 = scalar_lea.vmem %s0, %s311
        %p313 = pneg %p44
        %p314 = pneg %p41
        %p315 = pneg %p65
        %p316 = pneg %p62
        %p317 = pneg %p86
        %p318 = pneg %p83
        %p319 = pneg %p107
        %p320 = pneg %p104
        %p321 = pneg %p128
        %p322 = pneg %p125
        %p323 = pneg %p149
        %p324 = pneg %p146
        %p325 = pneg %p170
        %p326 = pneg %p167
        %p327 = pneg %p191
        %p328 = pneg %p188
        %p329 = pneg %p212
        %p330 = pneg %p209
        %p331 = pneg %p238
        %p332 = pneg %p235
        %p333 = scmp.lt.s32.totalorder %s23, 1
        %s334 = scalar_select %p333, %s23, 1
        %s335 = smul.addr %s334, 8
        %s336 = scalar_lea.vmem %s9, %s335
        %p337 = scmp.lt.s32.totalorder %s23, 1
        %s338 = scalar_select %p337, %s23, 1
        %s339 = smul.addr %s338, 8
        %s340 = scalar_lea.vmem %s0, %s339
        %p341 = scmp.lt.s32.totalorder %s23, 1
        %s342 = scalar_select %p341, %s23, 1
        %s343 = smul.addr %s342, 8
        %s344 = scalar_lea.vmem %s9, %s343
        %v345 = vld [vmem:[%s340] sm:$0xff]
        %v346 = vld [vmem:[%s1] sm:$0xff]
        %v347 = vld [vmem:[%s2] sm:$0x1]
        %v349 = vlaneseq
        %v350 = vshrl.u32 %v349, 7
        %v351 = vsub.s32 0, %v350
        %v352 = vrot.slane %v347, %v351
        %vm354 = vcmask 64512
        %v356 = vsel %vm354, %v345, 0
        %358 = vmatprep.subr.mxu0 0.0
        %359 = vmatpush1.msra.mxu0 %v346
        %360 = vmatprep.subr.mxu0 0.0
        %361 = vmatpush1.msra.mxu0 0.0
        %362 = vmatprep.subr.mxu0 0.0
        %363 = vmatpush1.msra.mxu0 0.0
        %364 = vmatprep.subr.mxu0 0.0
        %365 = vmatpush1.msra.mxu0 0.0
        %366 = vmatprep.subr.mxu0 0.0
        %367 = vmatpush1.msra.mxu0 0.0
        %368 = vmatprep.subr.mxu0 0.0
        %369 = vmatpush1.msra.mxu0 0.0
        %370 = vmatprep.subr.mxu0 0.0
        %371 = vmatpush1.msra.mxu0 0.0
        %372 = vmatprep.subr.mxu0 0.0
        %373 = vmatpush1.msra.mxu0 0.0
        %374 = vmatprep.subr.mxu0 0.0
        %375 = vmatpush1.msra.mxu0 0.0
        %376 = vmatprep.subr.mxu0 0.0
        %377 = vmatpush1.msra.mxu0 0.0
        %378 = vmatprep.subr.mxu0 0.0
        %379 = vmatpush1.msra.mxu0 0.0
        %380 = vmatprep.subr.mxu0 0.0
        %381 = vmatpush1.msra.mxu0 0.0
        %382 = vmatprep.subr.mxu0 0.0
        %383 = vmatpush1.msra.mxu0 0.0
        %384 = vmatprep.subr.mxu0 0.0
        %385 = vmatpush1.msra.mxu0 0.0
        %386 = vmatprep.subr.mxu0 0.0
        %387 = vmatpush1.msra.mxu0 0.0
        %388 = vmatprep.subr.mxu0 0.0
        %389 = vmatpush1.msra.mxu0 0.0
        %390 = vmatprep.subr.mxu0 0.0
        %391 = vmatpush1.msra.mxu0 0.0
        %392 = vmatprep.subr.mxu0 0.0
        %393 = vmatpush1.msra.mxu0 0.0
        %394 = vmatprep.subr.mxu0 0.0
        %395 = vmatpush1.msra.mxu0 0.0
        %396 = vmatprep.subr.mxu0 0.0
        %397 = vmatpush1.msra.mxu0 0.0
        %398 = vmatprep.subr.mxu0 0.0
        %399 = vmatpush1.msra.mxu0 0.0
        %400 = vmatprep.subr.mxu0 0.0
        %401 = vmatpush1.msra.mxu0 0.0
        %402 = vmatprep.subr.mxu0 0.0
        %403 = vmatpush1.msra.mxu0 0.0
        %404 = vmatprep.subr.mxu0 0.0
        %405 = vmatpush1.msra.mxu0 0.0
        %406 = vmatprep.subr.mxu0 0.0
        %407 = vmatpush1.msra.mxu0 0.0
        %408 = vmatprep.subr.mxu0 0.0
        %409 = vmatpush1.msra.mxu0 0.0
        %410 = vmatprep.subr.mxu0 0.0
        %411 = vmatpush1.msra.mxu0 0.0
        %412 = vmatprep.subr.mxu0 0.0
        %413 = vmatpush1.msra.mxu0 0.0
        %414 = vmatprep.subr.mxu0 0.0
        %415 = vmatpush1.msra.mxu0 0.0
        %416 = vmatprep.subr.mxu0 0.0
        %417 = vmatpush1.msra.mxu0 0.0
        %418 = vmatprep.subr.mxu0 0.0
        %419 = vmatpush1.msra.mxu0 0.0
        %420 = vmatprep.subr.mxu0 0.0
        %421 = vmatpush1.msra.mxu0 0.0
        %422 = vmatprep.mubr.f32.mxu0 0.0
        %423 = vmatmul.mubr.f32.gmra.mrb[0].mxu0 %v356
        %v424 = vpop.f32.mrb[0].mxu0
        %v425 = vadd.f32 %v352, %v424
        %v426 = vpop.f32.mrb[0].mxu0
        %427 = vdwg.mxu0
        %v428 = vmul.f32 %v425, 0.5
        %v429 = vtanh.pop %v428
        %v430 = vmul.f32 %v429, 0.5
        %v431 = vadd.f32 %v430, 0.5
        %v432 = vld [vmem:[%s3] sm:$0xff]
        %v433 = vld [vmem:[%s3 + $0x8] sm:$0xff]
        %v434 = vld [vmem:[%s3 + $0x10] sm:$0xff]
        %v435 = vld [vmem:[%s3 + $0x18] sm:$0xff]
        %v436 = vld [vmem:[%s3 + $0x20] sm:$0xff]
        %v437 = vld [vmem:[%s3 + $0x28] sm:$0xff]
        %v438 = vld [vmem:[%s3 + $0x30] sm:$0xff]
        %v439 = vld [vmem:[%s3 + $0x38] sm:$0xff]
        %v440 = vld [vmem:[%s3 + $0x40] sm:$0xff]
        %v441 = vld [vmem:[%s3 + $0x48] sm:$0xff]
        %v442 = vld [vmem:[%s3 + $0x50] sm:$0xff]
        %v443 = vld [vmem:[%s3 + $0x58] sm:$0xff]
        %v444 = vld [vmem:[%s3 + $0x60] sm:$0xff]
        %v445 = vld [vmem:[%s3 + $0x68] sm:$0xff]
        %v446 = vld [vmem:[%s3 + $0x70] sm:$0xff]
        %v447 = vld [vmem:[%s3 + $0x78] sm:$0xff]
        %v448 = vld [vmem:[%s4] sm:$0x1]
        %v450 = vlaneseq
        %v451 = vshrl.u32 %v450, 7
        %v452 = vsub.s32 0, %v451
        %v453 = vrot.slane %v448, %v452
        %455 = vmatprep.subr.mxu0 0.0
        %456 = vmatpush1.msra.mxu0 %v432
        %457 = vmatprep.subr.mxu0 0.0
        %458 = vmatpush1.msra.mxu0 %v433
        %459 = vmatprep.subr.mxu0 0.0
        %460 = vmatpush1.msra.mxu0 %v434
        %461 = vmatprep.subr.mxu0 0.0
        %462 = vmatpush1.msra.mxu0 %v435
        %463 = vmatprep.subr.mxu0 0.0
        %464 = vmatpush1.msra.mxu0 %v436
        %465 = vmatprep.subr.mxu0 0.0
        %466 = vmatpush1.msra.mxu0 %v437
        %467 = vmatprep.subr.mxu0 0.0
        %468 = vmatpush1.msra.mxu0 %v438
        %469 = vmatprep.subr.mxu0 0.0
        %470 = vmatpush1.msra.mxu0 %v439
        %471 = vmatprep.subr.mxu0 0.0
        %472 = vmatpush1.msra.mxu0 %v440
        %473 = vmatprep.subr.mxu0 0.0
        %474 = vmatpush1.msra.mxu0 %v441
        %475 = vmatprep.subr.mxu0 0.0
        %476 = vmatpush1.msra.mxu0 %v442
        %477 = vmatprep.subr.mxu0 0.0
        %478 = vmatpush1.msra.mxu0 %v443
        %479 = vmatprep.subr.mxu0 0.0
        %480 = vmatpush1.msra.mxu0 %v444
        %481 = vmatprep.subr.mxu0 0.0
        %482 = vmatpush1.msra.mxu0 %v445
        %483 = vmatprep.subr.mxu0 0.0
        %484 = vmatpush1.msra.mxu0 %v446
        %485 = vmatprep.subr.mxu0 0.0
        %486 = vmatpush1.msra.mxu0 %v447
        %487 = vmatprep.subr.mxu0 0.0
        %488 = vmatpush1.msra.mxu0 0.0
        %489 = vmatprep.subr.mxu0 0.0
        %490 = vmatpush1.msra.mxu0 0.0
        %491 = vmatprep.subr.mxu0 0.0
        %492 = vmatpush1.msra.mxu0 0.0
        %493 = vmatprep.subr.mxu0 0.0
        %494 = vmatpush1.msra.mxu0 0.0
        %495 = vmatprep.subr.mxu0 0.0
        %496 = vmatpush1.msra.mxu0 0.0
        %497 = vmatprep.subr.mxu0 0.0
        %498 = vmatpush1.msra.mxu0 0.0
        %499 = vmatprep.subr.mxu0 0.0
        %500 = vmatpush1.msra.mxu0 0.0
        %501 = vmatprep.subr.mxu0 0.0
        %502 = vmatpush1.msra.mxu0 0.0
        %503 = vmatprep.subr.mxu0 0.0
        %504 = vmatpush1.msra.mxu0 0.0
        %505 = vmatprep.subr.mxu0 0.0
        %506 = vmatpush1.msra.mxu0 0.0
        %507 = vmatprep.subr.mxu0 0.0
        %508 = vmatpush1.msra.mxu0 0.0
        %509 = vmatprep.subr.mxu0 0.0
        %510 = vmatpush1.msra.mxu0 0.0
        %511 = vmatprep.subr.mxu0 0.0
        %512 = vmatpush1.msra.mxu0 0.0
        %513 = vmatprep.subr.mxu0 0.0
        %514 = vmatpush1.msra.mxu0 0.0
        %515 = vmatprep.subr.mxu0 0.0
        %516 = vmatpush1.msra.mxu0 0.0
        %517 = vmatprep.subr.mxu0 0.0
        %518 = vmatpush1.msra.mxu0 0.0
        %519 = vmatprep.mubr.f32.mxu0 0.0
        %520 = vmatmul.mubr.f32.gmra.mrb[0].mxu0 %v431
        %v521 = vpop.f32.mrb[0].mxu0
        %v522 = vadd.f32 %v453, %v521
        %v523 = vpop.f32.mrb[0].mxu0
        %524 = vdwg.mxu0
        %v525 = vmul.f32 %v522, 0.5
        %v526 = vtanh.pop %v525
        %v527 = vmul.f32 %v526, 0.5
        %v528 = vadd.f32 %v527, 0.5
        %v529 = vld [vmem:[#allocation3] sm:$0xff]
        %v530 = vld [vmem:[#allocation3 + $0x8] sm:$0xff]
        %v531 = vld [vmem:[#allocation3 + $0x10] sm:$0xff]
        %v532 = vld [vmem:[#allocation3 + $0x18] sm:$0xff]
        %v533 = vld [vmem:[#allocation3 + $0x20] sm:$0xff]
        %v534 = vld [vmem:[#allocation3 + $0x28] sm:$0xff]
        %v535 = vld [vmem:[#allocation3 + $0x30] sm:$0xff]
        %v536 = vld [vmem:[#allocation3 + $0x38] sm:$0xff]
        %v537 = vld [vmem:[#allocation3 + $0x40] sm:$0xff]
        %v538 = vld [vmem:[#allocation3 + $0x48] sm:$0xff]
        %v539 = vld [vmem:[#allocation3 + $0x50] sm:$0xff]
        %v540 = vld [vmem:[#allocation3 + $0x58] sm:$0xff]
        %v541 = vld [vmem:[#allocation3 + $0x60] sm:$0xff]
        %v542 = vld [vmem:[#allocation3 + $0x68] sm:$0xff]
        %v543 = vld [vmem:[#allocation3 + $0x70] sm:$0xff]
        %v544 = vld [vmem:[#allocation3 + $0x78] sm:$0xff]
        %v545 = vld [vmem:[%s6] sm:$0x1]
        %v547 = vlaneseq
        %v548 = vshrl.u32 %v547, 7
        %v549 = vsub.s32 0, %v548
        %v550 = vrot.slane %v545, %v549
        %552 = vmatprep.subr.mxu0 0.0
        %553 = vmatpush1.msra.mxu0 %v529
        %554 = vmatprep.subr.mxu0 0.0
        %555 = vmatpush1.msra.mxu0 %v530
        %556 = vmatprep.subr.mxu0 0.0
        %557 = vmatpush1.msra.mxu0 %v531
        %558 = vmatprep.subr.mxu0 0.0
        %559 = vmatpush1.msra.mxu0 %v532
        %560 = vmatprep.subr.mxu0 0.0
        %561 = vmatpush1.msra.mxu0 %v533
        %562 = vmatprep.subr.mxu0 0.0
        %563 = vmatpush1.msra.mxu0 %v534
        %564 = vmatprep.subr.mxu0 0.0
        %565 = vmatpush1.msra.mxu0 %v535
        %566 = vmatprep.subr.mxu0 0.0
        %567 = vmatpush1.msra.mxu0 %v536
        %568 = vmatprep.subr.mxu0 0.0
        %569 = vmatpush1.msra.mxu0 %v537
        %570 = vmatprep.subr.mxu0 0.0
        %571 = vmatpush1.msra.mxu0 %v538
        %572 = vmatprep.subr.mxu0 0.0
        %573 = vmatpush1.msra.mxu0 %v539
        %574 = vmatprep.subr.mxu0 0.0
        %575 = vmatpush1.msra.mxu0 %v540
        %576 = vmatprep.subr.mxu0 0.0
        %577 = vmatpush1.msra.mxu0 %v541
        %578 = vmatprep.subr.mxu0 0.0
        %579 = vmatpush1.msra.mxu0 %v542
        %580 = vmatprep.subr.mxu0 0.0
        %581 = vmatpush1.msra.mxu0 %v543
        %582 = vmatprep.subr.mxu0 0.0
        %583 = vmatpush1.msra.mxu0 %v544
        %584 = vmatprep.subr.mxu0 0.0
        %585 = vmatpush1.msra.mxu0 0.0
        %586 = vmatprep.subr.mxu0 0.0
        %587 = vmatpush1.msra.mxu0 0.0
        %588 = vmatprep.subr.mxu0 0.0
        %589 = vmatpush1.msra.mxu0 0.0
        %590 = vmatprep.subr.mxu0 0.0
        %591 = vmatpush1.msra.mxu0 0.0
        %592 = vmatprep.subr.mxu0 0.0
        %593 = vmatpush1.msra.mxu0 0.0
        %594 = vmatprep.subr.mxu0 0.0
        %595 = vmatpush1.msra.mxu0 0.0
        %596 = vmatprep.subr.mxu0 0.0
        %597 = vmatpush1.msra.mxu0 0.0
        %598 = vmatprep.subr.mxu0 0.0
        %599 = vmatpush1.msra.mxu0 0.0
        %600 = vmatprep.subr.mxu0 0.0
        %601 = vmatpush1.msra.mxu0 0.0
        %602 = vmatprep.subr.mxu0 0.0
        %603 = vmatpush1.msra.mxu0 0.0
        %604 = vmatprep.subr.mxu0 0.0
        %605 = vmatpush1.msra.mxu0 0.0
        %606 = vmatprep.subr.mxu0 0.0
        %607 = vmatpush1.msra.mxu0 0.0
        %608 = vmatprep.subr.mxu0 0.0
        %609 = vmatpush1.msra.mxu0 0.0
        %610 = vmatprep.subr.mxu0 0.0
        %611 = vmatpush1.msra.mxu0 0.0
        %612 = vmatprep.subr.mxu0 0.0
        %613 = vmatpush1.msra.mxu0 0.0
        %614 = vmatprep.subr.mxu0 0.0
        %615 = vmatpush1.msra.mxu0 0.0
        %616 = vmatprep.mubr.f32.mxu0 0.0
        %617 = vmatmul.mubr.f32.gmra.mrb[0].mxu0 %v528
        %v618 = vpop.f32.mrb[0].mxu0
        %v619 = vadd.f32 %v550, %v618
        %v620 = vpop.f32.mrb[0].mxu0
        %621 = vdwg.mxu0
        %v622 = vmax.f32 %v619, 0.0
        %v623 = vld [vmem:[%s7] sm:$0xff]
        %v624 = vld [vmem:[%s7 + $0x8] sm:$0xff]
        %v625 = vld [vmem:[%s7 + $0x10] sm:$0xff]
        %v626 = vld [vmem:[%s7 + $0x18] sm:$0xff]
        %v627 = vld [vmem:[%s7 + $0x20] sm:$0xff]
        %v628 = vld [vmem:[%s7 + $0x28] sm:$0xff]
        %v629 = vld [vmem:[%s7 + $0x30] sm:$0xff]
        %v630 = vld [vmem:[%s7 + $0x38] sm:$0xff]
        %v631 = vld [vmem:[%s7 + $0x40] sm:$0xff]
        %v632 = vld [vmem:[%s7 + $0x48] sm:$0xff]
        %v633 = vld [vmem:[%s7 + $0x50] sm:$0xff]
        %v634 = vld [vmem:[%s7 + $0x58] sm:$0xff]
        %v635 = vld [vmem:[%s7 + $0x60] sm:$0xff]
        %v636 = vld [vmem:[%s7 + $0x68] sm:$0xff]
        %v637 = vld [vmem:[%s7 + $0x70] sm:$0xff]
        %v638 = vld [vmem:[%s7 + $0x78] sm:$0xff]
        %v639 = vld [vmem:[#allocation2] sm:$0x1]
        %v641 = vlaneseq
        %v642 = vshrl.u32 %v641, 7
        %v643 = vsub.s32 0, %v642
        %v644 = vrot.slane %v639, %v643
        %646 = vmatprep.subr.mxu0 0.0
        %647 = vmatpush1.msra.mxu0 %v623
        %648 = vmatprep.subr.mxu0 0.0
        %649 = vmatpush1.msra.mxu0 %v624
        %650 = vmatprep.subr.mxu0 0.0
        %651 = vmatpush1.msra.mxu0 %v625
        %652 = vmatprep.subr.mxu0 0.0
        %653 = vmatpush1.msra.mxu0 %v626
        %654 = vmatprep.subr.mxu0 0.0
        %655 = vmatpush1.msra.mxu0 %v627
        %656 = vmatprep.subr.mxu0 0.0
        %657 = vmatpush1.msra.mxu0 %v628
        %658 = vmatprep.subr.mxu0 0.0
        %659 = vmatpush1.msra.mxu0 %v629
        %660 = vmatprep.subr.mxu0 0.0
        %661 = vmatpush1.msra.mxu0 %v630
        %662 = vmatprep.subr.mxu0 0.0
        %663 = vmatpush1.msra.mxu0 %v631
        %664 = vmatprep.subr.mxu0 0.0
        %665 = vmatpush1.msra.mxu0 %v632
        %666 = vmatprep.subr.mxu0 0.0
        %667 = vmatpush1.msra.mxu0 %v633
        %668 = vmatprep.subr.mxu0 0.0
        %669 = vmatpush1.msra.mxu0 %v634
        %670 = vmatprep.subr.mxu0 0.0
        %671 = vmatpush1.msra.mxu0 %v635
        %672 = vmatprep.subr.mxu0 0.0
        %673 = vmatpush1.msra.mxu0 %v636
        %674 = vmatprep.subr.mxu0 0.0
        %675 = vmatpush1.msra.mxu0 %v637
        %676 = vmatprep.subr.mxu0 0.0
        %677 = vmatpush1.msra.mxu0 %v638
        %678 = vmatprep.subr.mxu0 0.0
        %679 = vmatpush1.msra.mxu0 0.0
        %680 = vmatprep.subr.mxu0 0.0
        %681 = vmatpush1.msra.mxu0 0.0
        %682 = vmatprep.subr.mxu0 0.0
        %683 = vmatpush1.msra.mxu0 0.0
        %684 = vmatprep.subr.mxu0 0.0
        %685 = vmatpush1.msra.mxu0 0.0
        %686 = vmatprep.subr.mxu0 0.0
        %687 = vmatpush1.msra.mxu0 0.0
        %688 = vmatprep.subr.mxu0 0.0
        %689 = vmatpush1.msra.mxu0 0.0
        %690 = vmatprep.subr.mxu0 0.0
        %691 = vmatpush1.msra.mxu0 0.0
        %692 = vmatprep.subr.mxu0 0.0
        %693 = vmatpush1.msra.mxu0 0.0
        %694 = vmatprep.subr.mxu0 0.0
        %695 = vmatpush1.msra.mxu0 0.0
        %696 = vmatprep.subr.mxu0 0.0
        %697 = vmatpush1.msra.mxu0 0.0
        %698 = vmatprep.subr.mxu0 0.0
        %699 = vmatpush1.msra.mxu0 0.0
        %700 = vmatprep.subr.mxu0 0.0
        %701 = vmatpush1.msra.mxu0 0.0
        %702 = vmatprep.subr.mxu0 0.0
        %703 = vmatpush1.msra.mxu0 0.0
        %704 = vmatprep.subr.mxu0 0.0
        %705 = vmatpush1.msra.mxu0 0.0
        %706 = vmatprep.subr.mxu0 0.0
        %707 = vmatpush1.msra.mxu0 0.0
        %708 = vmatprep.subr.mxu0 0.0
        %709 = vmatpush1.msra.mxu0 0.0
        %710 = vmatprep.mubr.f32.mxu0 0.0
        %711 = vmatmul.mubr.f32.gmra.mrb[0].mxu0 %v622
        %v712 = vpop.f32.mrb[0].mxu0
        %v713 = vadd.f32 %v644, %v712
        %v714 = vpop.f32.mrb[0].mxu0
        %715 = vdwg.mxu0
        %vm716 = vcmask 7168
        %717 = vst.msk [vmem:[%s344] sm:$0xff] %vm716, %v713
        %p718 = scmp.lt.s32.totalorder %s23, 1
        %s719 = scalar_select %p718, %s23, 1
        %s720 = smul.addr %s719, 8
        %s721 = scalar_lea.vmem %s9, %s720
        // Predicated region
        $region61: #{mlp_forward.1} parent=55 // pred_check
          %p722 = pneg %p235
        $region62: #{mlp_forward.1} parent=55 // pred_check_branch
          %724 = sbr.rel (%p722) target = $region64
        $region63: #{mlp_forward.1} parent=55 // pred_region
          _
        $region64: #{mlp_forward.1} parent=55 // pred_fallthru
          _
      $region56: #{mlp_forward.1} parent=5 // pred_fallthru
        _
      %p725 = scmp.le.s32.totalorder 2, %s18
      // Predicated region
      $region65: #{mlp_forward.1} parent=5 // pred_check
        %p726 = pneg %p725
      $region66: #{mlp_forward.1} parent=5 // pred_check_branch
        %728 = sbr.rel (%p726) target = $region68
      $region67: #{mlp_forward.1} parent=5 // pred_region
        %s729 = ssub.s32 %s18, 2
        // Predicated region
        $region69: #{mlp_forward.1} parent=67 // pred_check
          %p730 = pneg %p241
        $region70: #{mlp_forward.1} parent=67 // pred_check_branch
          %732 = sbr.rel (%p730) target = $region72
        $region71: #{mlp_forward.1} parent=67 // pred_region
          %p733 = scmp.lt.s32.totalorder %s24, 1
          %s734 = scalar_select %p733, %s24, 1
          %s735 = smul.addr %s734, 8
          %s736 = scalar_lea.vmem %s9, %s735
        $region72: #{mlp_forward.1} parent=67 // pred_fallthru
          _
      $region68: #{mlp_forward.1} parent=5 // pred_fallthru
        _
    $region6: #{mlp_forward.1} parent=1 // loop_footer
      %s22 = sadd.s32 1, %s18
    $region7: #{mlp_forward.1} parent=1 // loop_footer_branch
      %17 = sbr.rel target = $region3
    $region8: #{mlp_forward.1} parent=1 // loop_exit
      _
    %737 = vsyncpa [#allocation4], 1
    %s738 = scalar_lea.sflag [#allocation4], 1
    %739 = vsyncpa %s738, 1

</llo_original>
